<compile_context>
chip_gen: v7x
topology: tpu7x:2x2x1
jax: 0.10.0
libtpu: 0.0.40
codegen_flags: <defaults>
</compile_context>

<pallas_src>
import functools

import jax
import jax.numpy as jnp
from jax.experimental import pallas as pl
from jax.experimental.pallas import tpu as pltpu


LANE = 128                         # lane width: feature dims padded to this
SUB = 16                           # bf16 activations -> (16, 128) native tile
TM_DEFAULT = 256                   # M tile: feeds the 2x256x256 MXU on v6e/v7x
TN_CHOICES = (1024, 512, 256, 128)
TK_CHOICES = (1024, 512, 256, 128)

ACT_DTYPE = jnp.bfloat16           # activation storage dtype

# Weight-resident gate: full (Din, Dout) bf16 weight (double buffered) must fit
# comfortably in VMEM on every generation, including v7x's 64 MiB per TC.
WEIGHT_RESIDENT_BYTES = 8 * 1024 * 1024
VMEM_CAP_BYTES = 56 * 1024 * 1024  # <= v7x physical; fine on v5e/v6e (128 MiB)
VMEM_FLOOR_BYTES = 32 * 1024 * 1024


def _round_up(n, m):
    return ((n + m - 1) // m) * m


def _pick_tile(dim, choices):
    for c in choices:
        if dim % c == 0:
            return c
    return dim  # unreachable for pre-padded dims (always multiples of 128)


def _pad_axis(a, target, axis):
    pad = target - a.shape[axis]
    if pad == 0:
        return a
    widths = [(0, 0)] * a.ndim
    widths[axis] = (0, pad)
    return jnp.pad(a, widths)


def _vmem_limit(workset_bytes):
    return int(min(max(VMEM_FLOOR_BYTES, 4 * workset_bytes), VMEM_CAP_BYTES))


# ----------------------------------------------------------------------------
# Pallas kernel 1: fused linear  out = act(x @ w + b)
#   - weight-resident path (no K axis) when the weight fits VMEM
#   - (M, N, K)-tiled fallback with f32 VMEM accumulator otherwise
# ----------------------------------------------------------------------------
def _linear_resident_kernel(x_ref, w_ref, b_ref, o_ref, *, act):
    # bf16 x bf16 -> f32 on the MXU, full K in one pass.
    y = jnp.dot(x_ref[...], w_ref[...], preferred_element_type=jnp.float32)
    y = y + b_ref[...]                      # (1, tn) bias broadcasts
    if act == "gelu":
        # TODO(synk): PyTorch nn.GELU defaults to exact erf; tanh approximation
        # is used here for guaranteed Mosaic lowering.
        y = jax.nn.gelu(y, approximate=True)
    o_ref[...] = y.astype(o_ref.dtype)


def _linear_ktiled_kernel(x_ref, w_ref, b_ref, o_ref, acc_ref, *, act):
    k = pl.program_id(2)

    @pl.when(k == 0)
    def _():
        acc_ref[...] = jnp.zeros_like(acc_ref)

    acc_ref[...] += jnp.dot(x_ref[...], w_ref[...],
                            preferred_element_type=jnp.float32)

    @pl.when(k == pl.num_programs(2) - 1)
    def _():
        y = acc_ref[...] + b_ref[...]
        if act == "gelu":
            y = jax.nn.gelu(y, approximate=True)
        o_ref[...] = y.astype(o_ref.dtype)


def pallas_linear(x, w, b, act="none", out_dtype=ACT_DTYPE):
    """out = act(x @ w + b).

    x: [M, Din] (any float dtype, cast to bf16), Din % 128 == 0
    w: [Din, Dout] bf16 (zero-padded), Dout % 128 == 0
    b: [1, Dout] f32
    """
    M, Din = x.shape
    Dout = w.shape[1]
    assert Din % LANE == 0 and Dout % LANE == 0, (Din, Dout)

    x = x.astype(ACT_DTYPE)
    tm = min(TM_DEFAULT, _round_up(M, SUB))
    Mp = _round_up(M, tm)
    xp = _pad_axis(x, Mp, 0)
    out_elem = jnp.dtype(out_dtype).itemsize
    w_bytes = Din * Dout * 2

    if w_bytes <= WEIGHT_RESIDENT_BYTES:
        # Weight-resident path: grid over (M tiles, N tiles), full K per block.
        tn = _pick_tile(Dout, TN_CHOICES)
        grid = (Mp // tm, Dout // tn)
        workset = 2 * (tm * Din * 2 + Din * tn * 2 + tn * 4 + tm * tn * out_elem)
        restream = Mp // tm  # weight/bias blocks re-fetched once per M tile
        cost = pl.CostEstimate(
            flops=2 * Mp * Din * Dout,
            transcendentals=Mp * Dout if act == "gelu" else 0,
            bytes_accessed=(Mp * Din * 2 + restream * (Din * Dout * 2 + Dout * 4)
                            + Mp * Dout * out_elem),
        )
        out = pl.pallas_call(
            functools.partial(_linear_resident_kernel, act=act),
            out_shape=jax.ShapeDtypeStruct((Mp, Dout), out_dtype),
            grid_spec=pltpu.PrefetchScalarGridSpec(
                num_scalar_prefetch=0,
                grid=grid,
                in_specs=[
                    pl.BlockSpec((tm, Din), lambda i, j: (i, 0)),
                    pl.BlockSpec((Din, tn), lambda i, j: (0, j)),
                    pl.BlockSpec((1, tn), lambda i, j: (0, j)),
                ],
                out_specs=pl.BlockSpec((tm, tn), lambda i, j: (i, j)),
            ),
            compiler_params=pltpu.CompilerParams(
                dimension_semantics=("parallel", "parallel"),
                vmem_limit_bytes=_vmem_limit(workset),
            ),
            cost_estimate=cost,
        )(xp, w, b)
    else:
        # Large-weight fallback: (M, N, K) tiling with f32 VMEM accumulator.
        tn = _pick_tile(Dout, TN_CHOICES)
        tk = _pick_tile(Din, TK_CHOICES)
        grid = (Mp // tm, Dout // tn, Din // tk)
        workset = (2 * (tm * tk * 2 + tk * tn * 2 + tn * 4 + tm * tn * out_elem)
                   + tm * tn * 4)
        cost = pl.CostEstimate(
            flops=2 * Mp * Din * Dout,
            transcendentals=Mp * Dout if act == "gelu" else 0,
            bytes_accessed=((Dout // tn) * Mp * Din * 2          # x re-streamed per N
                            + (Mp // tm) * Din * Dout * 2        # w re-streamed per M
                            + (Mp // tm) * Dout * 4
                            + Mp * Dout * out_elem),
        )
        out = pl.pallas_call(
            functools.partial(_linear_ktiled_kernel, act=act),
            out_shape=jax.ShapeDtypeStruct((Mp, Dout), out_dtype),
            grid_spec=pltpu.PrefetchScalarGridSpec(
                num_scalar_prefetch=0,
                grid=grid,
                in_specs=[
                    pl.BlockSpec((tm, tk), lambda i, j, k: (i, k)),
                    pl.BlockSpec((tk, tn), lambda i, j, k: (k, j)),
                    pl.BlockSpec((1, tn), lambda i, j, k: (0, j)),
                ],
                out_specs=pl.BlockSpec((tm, tn), lambda i, j, k: (i, j)),
                scratch_shapes=[pltpu.VMEM((tm, tn), jnp.float32)],
            ),
            compiler_params=pltpu.CompilerParams(
                dimension_semantics=("parallel", "parallel", "arbitrary"),
                vmem_limit_bytes=_vmem_limit(workset),
            ),
            cost_estimate=cost,
        )(xp, w, b)

    if Mp != M:
        out = out[:M]
    return out


# ----------------------------------------------------------------------------
# Pallas kernel 2: fused residual-block chain
#   h <- h + gelu(h @ W_d + b_d)   for d = start .. stop-1
# Activation stays resident in an f32 VMEM scratch across the whole chain;
# HBM input is read only at d==0 and the output written only at d==last.
# ----------------------------------------------------------------------------
def _block_chain_kernel(x_ref, w_ref, b_ref, o_ref, h_ref):
    d = pl.program_id(1)

    @pl.when(d == 0)
    def _():
        h_ref[...] = x_ref[...].astype(jnp.float32)

    h = h_ref[...]
    y = jnp.dot(h.astype(jnp.bfloat16), w_ref[...],
                preferred_element_type=jnp.float32)
    y = jax.nn.gelu(y + b_ref[...], approximate=True)
    out = h + y                      # residual read from VMEM carry, no extra DMA
    h_ref[...] = out

    @pl.when(d == pl.num_programs(1) - 1)
    def _():
        o_ref[...] = out.astype(o_ref.dtype)


def pallas_block_chain(x, w_stack, b_stack):
    """x: [M, D] bf16; w_stack: [depth, D, D] bf16; b_stack: [depth, 1, D] f32."""
    M, D = x.shape
    depth = int(w_stack.shape[0])
    assert depth >= 1 and D % LANE == 0

    x = x.astype(ACT_DTYPE)
    tm = min(TM_DEFAULT, _round_up(M, SUB))
    Mp = _round_up(M, tm)
    xp = _pad_axis(x, Mp, 0)
    workset = 2 * (tm * D * 2 + D * D * 2 + D * 4 + tm * D * 2) + tm * D * 4

    out = pl.pallas_call(
        _block_chain_kernel,
        out_shape=jax.ShapeDtypeStruct((Mp, D), ACT_DTYPE),
        grid_spec=pltpu.PrefetchScalarGridSpec(
            num_scalar_prefetch=0,
            grid=(Mp // tm, depth),
            in_specs=[
                pl.BlockSpec((tm, D), lambda i, d: (i, 0)),
                pl.BlockSpec((pl.Squeezed(), D, D), lambda i, d: (d, 0, 0)),
                pl.BlockSpec((pl.Squeezed(), 1, D), lambda i, d: (d, 0, 0)),
            ],
            out_specs=pl.BlockSpec((tm, D), lambda i, d: (i, 0)),
            scratch_shapes=[pltpu.VMEM((tm, D), jnp.float32)],
        ),
        compiler_params=pltpu.CompilerParams(
            dimension_semantics=("parallel", "arbitrary"),
            vmem_limit_bytes=_vmem_limit(workset),
        ),
        cost_estimate=pl.CostEstimate(
            flops=2 * Mp * D * D * depth,
            transcendentals=Mp * D * depth,
            bytes_accessed=(Mp * D * 2 * 2                              # x in + out
                            + (Mp // tm) * depth * (D * D * 2 + D * 4)),  # weights
        ),
    )(xp, w_stack, b_stack)
    if Mp != M:
        out = out[:M]
    return out


# ----------------------------------------------------------------------------
# Synthetic anchor model (ViT-like): patch embed -> residual blocks -> pool -> head
# Weights zero-padded to 128-lane multiples at build time, stored bf16 for the MXU.
# TODO(synk): each anchor "block" is Linear+GELU+residual, not a full transformer
#             block (no attention/LayerNorm); the PyTorch SNNet spec treats anchors
#             as opaque modules so this is the synthetic anchor used for the demo.
# ----------------------------------------------------------------------------
class Anchor:
    def __init__(self, key, embed_dim, depth, in_chans, img_size, patch_size,
                 num_classes):
        self.embed_dim = embed_dim
        self.patch_size = patch_size
        self.num_classes = num_classes
        self.depth = depth
        self.d_pad = _round_up(embed_dim, LANE)
        self.c_pad = _round_up(num_classes, LANE)
        patch_dim = in_chans * patch_size * patch_size
        self.patch_dim = patch_dim
        self.patch_dim_pad = _round_up(patch_dim, LANE)

        keys = jax.random.split(key, depth + 2)
        scale = 0.02

        def pad2(w, rows, cols):
            return _pad_axis(_pad_axis(w, rows, 0), cols, 1)

        pw = jax.random.normal(keys[0], (patch_dim, embed_dim), jnp.float32) * scale
        self.patch_w = pad2(pw, self.patch_dim_pad, self.d_pad).astype(jnp.bfloat16)
        self.patch_b = jnp.zeros((1, self.d_pad), jnp.float32)

        bw = []
        for d in range(depth):
            w = jax.random.normal(keys[1 + d], (embed_dim, embed_dim),
                                  jnp.float32) * scale
            bw.append(pad2(w, self.d_pad, self.d_pad))
        self.block_w = jnp.stack(bw).astype(jnp.bfloat16)        # [depth, D, D]
        self.block_b = jnp.zeros((depth, 1, self.d_pad), jnp.float32)

        hw = jax.random.normal(keys[-1], (embed_dim, num_classes),
                               jnp.float32) * scale
        self.head_w = pad2(hw, self.d_pad, self.c_pad).astype(jnp.bfloat16)
        self.head_b = jnp.zeros((1, self.c_pad), jnp.float32)

    # number of blocks (PyTorch: len(anc.blocks))
    @property
    def blocks(self):
        return list(range(self.depth))

    def _patchify(self, x):
        B, C, H, W = x.shape
        P = self.patch_size
        x = x.reshape(B, C, H // P, P, W // P, P)
        x = jnp.transpose(x, (0, 2, 4, 1, 3, 5))
        return x.reshape(B, (H // P) * (W // P), C * P * P)

    def _embed(self, x):
        tok = self._patchify(x)
        B, N, Dp = tok.shape
        tok = _pad_axis(tok.reshape(B * N, Dp), self.patch_dim_pad, 1)
        y = pallas_linear(tok, self.patch_w, self.patch_b)
        return y.reshape(B, N, self.d_pad)

    def _run_blocks(self, h2, start, stop):
        """Run residual blocks [start, stop) on flattened [M, D] activations."""
        if stop <= start:
            return h2
        D = h2.shape[1]
        if D * D * 2 <= WEIGHT_RESIDENT_BYTES:
            return pallas_block_chain(h2, self.block_w[start:stop],
                                      self.block_b[start:stop])
        # TODO(synk): very-large-D fallback adds the residual in XLA (extra stream).
        for i in range(start, stop):
            y = pallas_linear(h2, self.block_w[i], self.block_b[i],
                              act="gelu", out_dtype=jnp.float32)
            h2 = (h2.astype(jnp.float32) + y).astype(ACT_DTYPE)
        return h2

    def _head(self, h):
        pooled = jnp.mean(h.astype(jnp.float32), axis=1).astype(ACT_DTYPE)
        logits = pallas_linear(pooled, self.head_w, self.head_b,
                               out_dtype=jnp.float32)
        return logits[:, :self.num_classes]      # slice off lane padding

    def forward_until(self, x, blk_id):
        h = self._embed(x)
        B, N, D = h.shape
        h2 = self._run_blocks(h.reshape(B * N, D), 0, blk_id + 1)
        return h2.reshape(B, N, D)

    def forward_from(self, x, blk_id):
        B, N, D = x.shape
        h2 = self._run_blocks(x.reshape(B * N, D).astype(ACT_DTYPE),
                              blk_id, self.depth)
        return self._head(h2.reshape(B, N, D))

    def __call__(self, x):
        h = self._embed(x)
        B, N, D = h.shape
        h2 = self._run_blocks(h.reshape(B * N, D), 0, self.depth)
        return self._head(h2.reshape(B, N, D))


# ----------------------------------------------------------------------------
# SNNet
# ----------------------------------------------------------------------------
def get_stitch_configs_general_unequal(depths):
    depths = sorted(depths)
    total_configs = [{"comb_id": [1]}]
    num_stitches = depths[0]
    for i in range(num_stitches):
        total_configs.append({"comb_id": (0, 1),
                              "stitch_cfgs": (i, (i + 1) * (depths[1] // depths[0]))})
    return total_configs, num_stitches


class SNNet:
    def __init__(self, anchors, key):
        self.anchors = anchors
        self.depths = [len(a.blocks) for a in anchors]
        total_configs, num_stitches = get_stitch_configs_general_unequal(self.depths)
        d_in, d_out = anchors[0].embed_dim, anchors[1].embed_dim
        d_in_pad, d_out_pad = anchors[0].d_pad, anchors[1].d_pad
        keys = jax.random.split(key, num_stitches)
        # StitchingLayer == plain Linear(d_in, d_out) since r defaults to 0.
        # TODO(synk): LoRA (r>0) branch of the Linear is never exercised by SNNet.
        # TODO(synk): ps_inv least-squares stitch init not implemented; stitch layers
        #             are randomly initialized (forward semantics identical).
        self.stitch_layers = []
        for k in keys:
            w = jax.random.normal(k, (d_in, d_out), jnp.float32) * 0.02
            wpad = _pad_axis(_pad_axis(w, d_in_pad, 0),
                             d_out_pad, 1).astype(jnp.bfloat16)
            self.stitch_layers.append((wpad, jnp.zeros((1, d_out_pad), jnp.float32)))
        self.stitch_configs = {i: c for i, c in enumerate(total_configs)}
        self.all_cfgs = list(self.stitch_configs.keys())
        self.num_configs = len(self.all_cfgs)
        self.stitch_config_id = 0
        self._jit_cache = {}

    def reset_stitch_id(self, stitch_config_id):
        self.stitch_config_id = stitch_config_id

    def _forward_cfg(self, cfg_id, x):
        cfg_dict = self.stitch_configs[cfg_id]
        comb_id = cfg_dict["comb_id"]
        if len(comb_id) == 1:
            return self.anchors[comb_id[0]](x)
        cfg = cfg_dict["stitch_cfgs"]
        h = self.anchors[comb_id[0]].forward_until(x, blk_id=cfg[0])
        w, b = self.stitch_layers[cfg[0]]
        B, N, D = h.shape
        h = pallas_linear(h.reshape(B * N, D), w, b).reshape(B, N, -1)
        return self.anchors[comb_id[1]].forward_from(h, blk_id=cfg[1])

    def forward(self, x):
        cfg_id = self.stitch_config_id
        fn = self._jit_cache.get(cfg_id)
        if fn is None:
            # One jitted program per stitch config: all pallas_calls in one XLA
            # program (no per-block dispatch).
            fn = jax.jit(functools.partial(self._forward_cfg, cfg_id))
            self._jit_cache[cfg_id] = fn
        return fn(x)

    def __call__(self, x):
        return self.forward(x)


# ----------------------------------------------------------------------------
# Demo
# ----------------------------------------------------------------------------
if __name__ == "__main__":
    key = jax.random.PRNGKey(0)
    k_x, k_a0, k_a1, k_sn = jax.random.split(key, 4)

    B, C, H, W = 2, 4, 16, 16
    P = 8                               # -> 4 tokens per image, patch_dim = 256
    num_classes = 10

    anchor_small = Anchor(k_a0, embed_dim=32, depth=2, in_chans=C,
                          img_size=H, patch_size=P, num_classes=num_classes)
    anchor_large = Anchor(k_a1, embed_dim=64, depth=4, in_chans=C,
                          img_size=H, patch_size=P, num_classes=num_classes)

    snnet = SNNet([anchor_small, anchor_large], k_sn)

    x = jax.random.normal(k_x, (B, C, H, W), jnp.float32)

    outs = []
    for cfg_id in snnet.all_cfgs:       # cfg 0: anchor[1] only; cfgs 1,2: stitched
        snnet.reset_stitch_id(cfg_id)
        out = snnet(x)
        out = jax.block_until_ready(out)
        assert out.shape == (B, num_classes), out.shape
        assert out.dtype == jnp.float32
        assert bool(jnp.all(jnp.isfinite(out)))
        outs.append(out)

    print("KERNEL_OK")
</pallas_src>

<mosaic_0001>
module attributes {stable_mosaic.version = 11 : i64} {
  func.func @_linear_resident_kernel(%arg0: i32, %arg1: i32, %arg2: memref<16x256xbf16, #tpu.memory_space<vmem>>, %arg3: memref<256x128xbf16, #tpu.memory_space<vmem>>, %arg4: memref<1x128xf32, #tpu.memory_space<vmem>>, %arg5: memref<16x128xbf16, #tpu.memory_space<vmem>>) attributes {dimension_semantics = [#tpu.dimension_semantics<parallel>, #tpu.dimension_semantics<parallel>], iteration_bounds = array<i64: 1, 1>, scalar_prefetch = 0 : i64, scratch_operands = 0 : i64, tpu.core_type = #tpu.core_type<tc>, window_params = [{transform_indices = @transform_0, window_bounds = array<i64: 16, 256>}, {transform_indices = @transform_1, window_bounds = array<i64: 256, 128>}, {transform_indices = @transform_2, window_bounds = array<i64: 1, 128>}, {transform_indices = @transform_3, window_bounds = array<i64: 16, 128>}]} {
    %c0 = arith.constant 0 : index
    %c0_0 = arith.constant 0 : index
    %0 = vector.load %arg2[%c0, %c0_0] : memref<16x256xbf16, #tpu.memory_space<vmem>>, vector<16x256xbf16>
    %c0_1 = arith.constant 0 : index
    %c0_2 = arith.constant 0 : index
    %1 = vector.load %arg3[%c0_1, %c0_2] : memref<256x128xbf16, #tpu.memory_space<vmem>>, vector<256x128xbf16>
    %cst = arith.constant dense<0.000000e+00> : vector<16x128xf32>
    %2 = tpu.matmul %0, %1, %cst {dimension_numbers = #tpu.dot_dimension_numbers<[1], [0], [0], [1], [0, 0, 1, 1], [], []>} : vector<16x256xbf16>, vector<256x128xbf16>, vector<16x128xf32> -> vector<16x128xf32>
    %c0_3 = arith.constant 0 : index
    %c0_4 = arith.constant 0 : index
    %3 = vector.load %arg4[%c0_3, %c0_4] : memref<1x128xf32, #tpu.memory_space<vmem>>, vector<1x128xf32>
    %4 = vector.broadcast %3 : vector<1x128xf32> to vector<16x128xf32>
    %5 = arith.addf %2, %4 : vector<16x128xf32>
    %6 = arith.truncf %5 : vector<16x128xf32> to vector<16x128xbf16>
    %c0_5 = arith.constant 0 : index
    %c0_6 = arith.constant 0 : index
    %7 = vector.load %arg5[%c0_5, %c0_6] : memref<16x128xbf16, #tpu.memory_space<vmem>>, vector<16x128xbf16>
    tpu.vector_store %arg5[%c0_5, %c0_6], %6 {strides = array<i32>} : memref<16x128xbf16, #tpu.memory_space<vmem>>, vector<16x128xbf16>,
    return
  }
  func.func @transform_0(%arg0: i32, %arg1: i32) -> (i32, i32) {
    %c0_i32 = arith.constant 0 : i32
    %c0_i32_0 = arith.constant 0 : i32
    return %arg0, %c0_i32 : i32, i32
  }
  func.func @transform_1(%arg0: i32, %arg1: i32) -> (i32, i32) {
    %c0_i32 = arith.constant 0 : i32
    %c0_i32_0 = arith.constant 0 : i32
    return %c0_i32, %arg1 : i32, i32
  }
  func.func @transform_2(%arg0: i32, %arg1: i32) -> (i32, i32) {
    %c0_i32 = arith.constant 0 : i32
    %c0_i32_0 = arith.constant 0 : i32
    return %c0_i32, %arg1 : i32, i32
  }
  func.func @transform_3(%arg0: i32, %arg1: i32) -> (i32, i32) {
    %c0_i32 = arith.constant 0 : i32
    return %arg0, %arg1 : i32, i32
  }
}

module attributes {stable_mosaic.version = 11 : i64} {
  func.func @_block_chain_kernel(%arg0: i32, %arg1: i32, %arg2: memref<16x128xbf16, #tpu.memory_space<vmem>>, %arg3: memref<1x128x128xbf16, #tpu.memory_space<vmem>>, %arg4: memref<1x1x128xf32, #tpu.memory_space<vmem>>, %arg5: memref<16x128xbf16, #tpu.memory_space<vmem>>, %arg6: memref<16x128xf32, #tpu.memory_space<vmem>>) attributes {dimension_semantics = [#tpu.dimension_semantics<parallel>, #tpu.dimension_semantics<arbitrary>], iteration_bounds = array<i64: 1, 4>, scalar_prefetch = 0 : i64, scratch_operands = 1 : i64, tpu.core_type = #tpu.core_type<tc>, window_params = [{transform_indices = @transform_0, window_bounds = array<i64: 16, 128>}, {transform_indices = @transform_1, window_bounds = array<i64: 1, 128, 128>}, {transform_indices = @transform_2, window_bounds = array<i64: 1, 1, 128>}, {transform_indices = @transform_3, window_bounds = array<i64: 16, 128>}]} {
    %c0_i32 = arith.constant 0 : i32
    %0 = arith.cmpi eq, %arg1, %c0_i32 : i32
    %1 = arith.extui %0 : i1 to i32
    %c0_i32_0 = arith.constant 0 : i32
    %2 = arith.cmpi ne, %1, %c0_i32_0 : i32
    scf.if %2 {
      %c0_15 = arith.constant 0 : index
      %c0_16 = arith.constant 0 : index
      %30 = vector.load %arg2[%c0_15, %c0_16] : memref<16x128xbf16, #tpu.memory_space<vmem>>, vector<16x128xbf16>
      %31 = arith.extf %30 : vector<16x128xbf16> to vector<16x128xf32>
      %c0_17 = arith.constant 0 : index
      %c0_18 = arith.constant 0 : index
      %32 = vector.load %arg6[%c0_17, %c0_18] : memref<16x128xf32, #tpu.memory_space<vmem>>, vector<16x128xf32>
      tpu.vector_store %arg6[%c0_17, %c0_18], %31 {strides = array<i32>} : memref<16x128xf32, #tpu.memory_space<vmem>>, vector<16x128xf32>,
    } else {
    }
    %c0 = arith.constant 0 : index
    %c0_1 = arith.constant 0 : index
    %3 = vector.load %arg6[%c0, %c0_1] : memref<16x128xf32, #tpu.memory_space<vmem>>, vector<16x128xf32>
    %4 = arith.truncf %3 : vector<16x128xf32> to vector<16x128xbf16>
    %c0_2 = arith.constant 0 : index
    %c0_3 = arith.constant 0 : index
    %c0_4 = arith.constant 0 : index
    %5 = vector.load %arg3[%c0_2, %c0_3, %c0_4] : memref<1x128x128xbf16, #tpu.memory_space<vmem>>, vector<1x128x128xbf16>
    %6 = vector.shape_cast %5 : vector<1x128x128xbf16> to vector<128x128xbf16>
    %cst = arith.constant dense<0.000000e+00> : vector<16x128xf32>
    %7 = tpu.matmul %4, %6, %cst {dimension_numbers = #tpu.dot_dimension_numbers<[1], [0], [0], [1], [0, 0, 1, 1], [], []>} : vector<16x128xbf16>, vector<128x128xbf16>, vector<16x128xf32> -> vector<16x128xf32>
    %c0_5 = arith.constant 0 : index
    %c0_6 = arith.constant 0 : index
    %c0_7 = arith.constant 0 : index
    %8 = vector.load %arg4[%c0_5, %c0_6, %c0_7] : memref<1x1x128xf32, #tpu.memory_space<vmem>>, vector<1x1x128xf32>
    %9 = vector.shape_cast %8 : vector<1x1x128xf32> to vector<1x128xf32>
    %10 = vector.broadcast %9 : vector<1x128xf32> to vector<16x128xf32>
    %11 = arith.addf %7, %10 : vector<16x128xf32>
    %12 = arith.mulf %11, %11 : vector<16x128xf32>
    %13 = arith.mulf %11, %12 : vector<16x128xf32>
    %cst_8 = arith.constant 4.471500e-02 : f32
    %14 = vector.broadcast %cst_8 : f32 to vector<16x128xf32>
    %15 = arith.mulf %14, %13 : vector<16x128xf32>
    %16 = arith.addf %11, %15 : vector<16x128xf32>
    %cst_9 = arith.constant 0.797884583 : f32
    %17 = vector.broadcast %cst_9 : f32 to vector<16x128xf32>
    %18 = arith.mulf %17, %16 : vector<16x128xf32>
    %19 = math.tanh %18 : vector<16x128xf32>
    %cst_10 = arith.constant 1.000000e+00 : f32
    %20 = vector.broadcast %cst_10 : f32 to vector<16x128xf32>
    %21 = arith.addf %20, %19 : vector<16x128xf32>
    %cst_11 = arith.constant 5.000000e-01 : f32
    %22 = vector.broadcast %cst_11 : f32 to vector<16x128xf32>
    %23 = arith.mulf %22, %21 : vector<16x128xf32>
    %24 = arith.mulf %11, %23 : vector<16x128xf32>
    %25 = arith.addf %3, %24 : vector<16x128xf32>
    %c0_12 = arith.constant 0 : index
    %c0_13 = arith.constant 0 : index
    %26 = vector.load %arg6[%c0_12, %c0_13] : memref<16x128xf32, #tpu.memory_space<vmem>>, vector<16x128xf32>
    tpu.vector_store %arg6[%c0_12, %c0_13], %25 {strides = array<i32>} : memref<16x128xf32, #tpu.memory_space<vmem>>, vector<16x128xf32>,
    %c3_i32 = arith.constant 3 : i32
    %27 = arith.cmpi eq, %arg1, %c3_i32 : i32
    %28 = arith.extui %27 : i1 to i32
    %c0_i32_14 = arith.constant 0 : i32
    %29 = arith.cmpi ne, %28, %c0_i32_14 : i32
    scf.if %29 {
      %30 = arith.truncf %25 : vector<16x128xf32> to vector<16x128xbf16>
      %c0_15 = arith.constant 0 : index
      %c0_16 = arith.constant 0 : index
      %31 = vector.load %arg5[%c0_15, %c0_16] : memref<16x128xbf16, #tpu.memory_space<vmem>>, vector<16x128xbf16>
      tpu.vector_store %arg5[%c0_15, %c0_16], %30 {strides = array<i32>} : memref<16x128xbf16, #tpu.memory_space<vmem>>, vector<16x128xbf16>,
    } else {
    }
    return
  }
  func.func @transform_0(%arg0: i32, %arg1: i32) -> (i32, i32) {
    %c0_i32 = arith.constant 0 : i32
    %c0_i32_0 = arith.constant 0 : i32
    return %arg0, %c0_i32 : i32, i32
  }
  func.func @transform_1(%arg0: i32, %arg1: i32) -> (i32, i32, i32) {
    %c0_i32 = arith.constant 0 : i32
    %c0_i32_0 = arith.constant 0 : i32
    %c0_i32_1 = arith.constant 0 : i32
    return %arg1, %c0_i32, %c0_i32_0 : i32, i32, i32
  }
  func.func @transform_2(%arg0: i32, %arg1: i32) -> (i32, i32, i32) {
    %c0_i32 = arith.constant 0 : i32
    %c0_i32_0 = arith.constant 0 : i32
    %c0_i32_1 = arith.constant 0 : i32
    return %arg1, %c0_i32, %c0_i32_0 : i32, i32, i32
  }
  func.func @transform_3(%arg0: i32, %arg1: i32) -> (i32, i32) {
    %c0_i32 = arith.constant 0 : i32
    %c0_i32_0 = arith.constant 0 : i32
    return %arg0, %c0_i32 : i32, i32
  }
}

module attributes {stable_mosaic.version = 11 : i64} {
  func.func @_linear_resident_kernel(%arg0: i32, %arg1: i32, %arg2: memref<16x128xbf16, #tpu.memory_space<vmem>>, %arg3: memref<128x128xbf16, #tpu.memory_space<vmem>>, %arg4: memref<1x128xf32, #tpu.memory_space<vmem>>, %arg5: memref<16x128xf32, #tpu.memory_space<vmem>>) attributes {dimension_semantics = [#tpu.dimension_semantics<parallel>, #tpu.dimension_semantics<parallel>], iteration_bounds = array<i64: 1, 1>, scalar_prefetch = 0 : i64, scratch_operands = 0 : i64, tpu.core_type = #tpu.core_type<tc>, window_params = [{transform_indices = @transform_0, window_bounds = array<i64: 16, 128>}, {transform_indices = @transform_1, window_bounds = array<i64: 128, 128>}, {transform_indices = @transform_2, window_bounds = array<i64: 1, 128>}, {transform_indices = @transform_3, window_bounds = array<i64: 16, 128>}]} {
    %c0 = arith.constant 0 : index
    %c0_0 = arith.constant 0 : index
    %0 = vector.load %arg2[%c0, %c0_0] : memref<16x128xbf16, #tpu.memory_space<vmem>>, vector<16x128xbf16>
    %c0_1 = arith.constant 0 : index
    %c0_2 = arith.constant 0 : index
    %1 = vector.load %arg3[%c0_1, %c0_2] : memref<128x128xbf16, #tpu.memory_space<vmem>>, vector<128x128xbf16>
    %cst = arith.constant dense<0.000000e+00> : vector<16x128xf32>
    %2 = tpu.matmul %0, %1, %cst {dimension_numbers = #tpu.dot_dimension_numbers<[1], [0], [0], [1], [0, 0, 1, 1], [], []>} : vector<16x128xbf16>, vector<128x128xbf16>, vector<16x128xf32> -> vector<16x128xf32>
    %c0_3 = arith.constant 0 : index
    %c0_4 = arith.constant 0 : index
    %3 = vector.load %arg4[%c0_3, %c0_4] : memref<1x128xf32, #tpu.memory_space<vmem>>, vector<1x128xf32>
    %4 = vector.broadcast %3 : vector<1x128xf32> to vector<16x128xf32>
    %5 = arith.addf %2, %4 : vector<16x128xf32>
    %c0_5 = arith.constant 0 : index
    %c0_6 = arith.constant 0 : index
    %6 = vector.load %arg5[%c0_5, %c0_6] : memref<16x128xf32, #tpu.memory_space<vmem>>, vector<16x128xf32>
    tpu.vector_store %arg5[%c0_5, %c0_6], %5 {strides = array<i32>} : memref<16x128xf32, #tpu.memory_space<vmem>>, vector<16x128xf32>,
    return
  }
  func.func @transform_0(%arg0: i32, %arg1: i32) -> (i32, i32) {
    %c0_i32 = arith.constant 0 : i32
    %c0_i32_0 = arith.constant 0 : i32
    return %arg0, %c0_i32 : i32, i32
  }
  func.func @transform_1(%arg0: i32, %arg1: i32) -> (i32, i32) {
    %c0_i32 = arith.constant 0 : i32
    %c0_i32_0 = arith.constant 0 : i32
    return %c0_i32, %arg1 : i32, i32
  }
  func.func @transform_2(%arg0: i32, %arg1: i32) -> (i32, i32) {
    %c0_i32 = arith.constant 0 : i32
    %c0_i32_0 = arith.constant 0 : i32
    return %c0_i32, %arg1 : i32, i32
  }
  func.func @transform_3(%arg0: i32, %arg1: i32) -> (i32, i32) {
    %c0_i32 = arith.constant 0 : i32
    return %arg0, %arg1 : i32, i32
  }
}

</mosaic_0001>

<llo_original>
// kernel: _forward_cfg.4
$region0: #{_forward_cfg.4}
  #allocation0 [shape = 'u32[]', space=smem, size = 0x4, offset = 0x4, fixed_abs, tag = 'smem constant byte address 0x4 - core index']
  #allocation1 [shape = 'u32[144,128]{1,0:T(1,128)}', space=vmem, size = 0x12000, scoped, tag = 'internal scratch']
  #allocation2 [shape = 'f32[16,128]{1,0:T(8,128)}', space=vmem, size = 0x2000, scoped, tag = 'scratch operand']
  %s0 = inlined_call_operand.vmem [shape: bf16[16,128], index: 0, kind: input, shape index: {}]
  %s1 = inlined_call_operand.vmem [shape: bf16[4,128,128], index: 1, kind: input, shape index: {}]
  %s2 = inlined_call_operand.vmem [shape: f32[4,1,128], index: 2, kind: input, shape index: {}]
  %s3 = inlined_call_operand.vmem [shape: bf16[16,128], index: 3, kind: output, shape index: {}]
  %s4 = sld [smem:[#allocation0]]
  $region53: #{_forward_cfg.4} parent=0
    _
  %s6 = ssub.s32 1, %s4
  %s7 = scalar_select 0, %s6, %s4
  loop: start=0, step=1, limit=6
  $region2: #{_forward_cfg.4} parent=0 // loop_pre_header
    _
  $region3: #{_forward_cfg.4} parent=0 // loop_header
    %s9 = sphi 0, %s13
    %p10 = scmp.ge.s32.totalorder %s9, 6
    %s16 = sphi 0, %s28
    %s17 = sphi 0, %s24
    %s18 = sphi 0, %s16
    %s19 = sphi 0, %s17
    %s20 = sphi 0, %s18
    %s21 = sphi 0, %s19
    %s31 = sphi 0, %s33
    %s34 = sphi 0, %s31
    %s35 = sphi 0, %s34
    %s51 = sphi 0, %s35
    %s57 = sphi 0, %s59
    %s60 = sphi 0, %s57
    %s61 = sphi 0, %s60
    %s77 = sphi 0, %s61
    %s83 = sphi 0, %s85
    %s86 = sphi 0, %s83
    %s87 = sphi 0, %s86
    %s103 = sphi 0, %s87
    %s109 = sphi 0, %s111
    %s112 = sphi 0, %s109
    %s113 = sphi 0, %s112
    %s129 = sphi 0, %s113
  $region4: #{_forward_cfg.4} parent=0 // loop_header_branch
    %12 = sbr.rel (%p10) target = $region8
  $region5: #{_forward_cfg.4} parent=0 // loop_body
    %s14 = ssub.s32 %s9, 1
    %s15 = ssub.s32 %s9, 2
    %s22 = sadd.s32 1, %s17
    %p23 = scmp.ge.s32.totalorder %s22, 4
    %s24 = scalar_select %p23, 0, %s22
    %s25 = sadd.s32 1, %s16
    %s26 = scalar_select %p23, %s25, %s16
    %p27 = scmp.ge.s32.totalorder %s26, 1
    %s28 = scalar_select %p27, 0, %s26
    %s29 = ssub.s32 %s16, %s28
    %p30 = scmp.eq.s32.totalorder %s29, 0
    %s32 = sadd.s32 %s31, 1
    %s33 = scalar_select %p30, %s31, %s32
    %p36 = pneg %p30
    %p37 = scmp.eq.s32.totalorder %s9, 3
    %p38 = por %p36, %p37
    %p39 = scmp.ne.s32.totalorder %s31, %s34
    %p40 = scmp.eq.s32.totalorder %s9, 0
    %p41 = por %p39, %p40
    %p42 = scmp.ne.s32.totalorder %s31, %s34
    %p43 = scmp.eq.s32.totalorder %s14, 3
    %p44 = por %p42, %p43
    %p45 = scmp.ne.s32.totalorder %s34, %s35
    %p46 = scmp.eq.s32.totalorder %s14, 0
    %p47 = por %p45, %p46
    %p48 = scmp.ne.s32.totalorder %s34, %s35
    %p49 = scmp.eq.s32.totalorder %s15, 3
    %p50 = por %p48, %p49
    %p52 = scmp.ne.s32.totalorder %s35, %s51
    %p53 = scmp.eq.s32.totalorder %s15, 0
    %p54 = por %p52, %p53
    %s55 = ssub.s32 %s17, %s24
    %p56 = scmp.eq.s32.totalorder %s55, 0
    %s58 = sadd.s32 %s57, 1
    %s59 = scalar_select %p56, %s57, %s58
    %p62 = pneg %p56
    %p63 = scmp.eq.s32.totalorder %s9, 3
    %p64 = por %p62, %p63
    %p65 = scmp.ne.s32.totalorder %s57, %s60
    %p66 = scmp.eq.s32.totalorder %s9, 0
    %p67 = por %p65, %p66
    %p68 = scmp.ne.s32.totalorder %s57, %s60
    %p69 = scmp.eq.s32.totalorder %s14, 3
    %p70 = por %p68, %p69
    %p71 = scmp.ne.s32.totalorder %s60, %s61
    %p72 = scmp.eq.s32.totalorder %s14, 0
    %p73 = por %p71, %p72
    %p74 = scmp.ne.s32.totalorder %s60, %s61
    %p75 = scmp.eq.s32.totalorder %s15, 3
    %p76 = por %p74, %p75
    %p78 = scmp.ne.s32.totalorder %s61, %s77
    %p79 = scmp.eq.s32.totalorder %s15, 0
    %p80 = por %p78, %p79
    %s81 = ssub.s32 %s17, %s24
    %p82 = scmp.eq.s32.totalorder %s81, 0
    %s84 = sadd.s32 %s83, 1
    %s85 = scalar_select %p82, %s83, %s84
    %p88 = pneg %p82
    %p89 = scmp.eq.s32.totalorder %s9, 3
    %p90 = por %p88, %p89
    %p91 = scmp.ne.s32.totalorder %s83, %s86
    %p92 = scmp.eq.s32.totalorder %s9, 0
    %p93 = por %p91, %p92
    %p94 = scmp.ne.s32.totalorder %s83, %s86
    %p95 = scmp.eq.s32.totalorder %s14, 3
    %p96 = por %p94, %p95
    %p97 = scmp.ne.s32.totalorder %s86, %s87
    %p98 = scmp.eq.s32.totalorder %s14, 0
    %p99 = por %p97, %p98
    %p100 = scmp.ne.s32.totalorder %s86, %s87
    %p101 = scmp.eq.s32.totalorder %s15, 3
    %p102 = por %p100, %p101
    %p104 = scmp.ne.s32.totalorder %s87, %s103
    %p105 = scmp.eq.s32.totalorder %s15, 0
    %p106 = por %p104, %p105
    %s107 = ssub.s32 %s16, %s28
    %p108 = scmp.eq.s32.totalorder %s107, 0
    %s110 = sadd.s32 %s109, 1
    %s111 = scalar_select %p108, %s109, %s110
    %p114 = pneg %p108
    %p115 = scmp.eq.s32.totalorder %s9, 3
    %p116 = por %p114, %p115
    %p117 = scmp.ne.s32.totalorder %s109, %s112
    %p118 = scmp.eq.s32.totalorder %s9, 0
    %p119 = por %p117, %p118
    %p120 = scmp.ne.s32.totalorder %s109, %s112
    %p121 = scmp.eq.s32.totalorder %s14, 3
    %p122 = por %p120, %p121
    %p123 = scmp.ne.s32.totalorder %s112, %s113
    %p124 = scmp.eq.s32.totalorder %s14, 0
    %p125 = por %p123, %p124
    %p126 = scmp.ne.s32.totalorder %s112, %s113
    %p127 = scmp.eq.s32.totalorder %s15, 3
    %p128 = por %p126, %p127
    %p130 = scmp.ne.s32.totalorder %s113, %s129
    %p131 = scmp.eq.s32.totalorder %s15, 0
    %p132 = por %p130, %p131
    %p133 = scmp.le.s32.totalorder 1, %s9
    %p134 = scmp.lt.s32.totalorder %s9, 5
    %p135 = pnand %p133, %p134
    %p136 = pneg %p135
    // Predicated region
    $region9: #{_forward_cfg.4} parent=5 // pred_check
      _
    $region10: #{_forward_cfg.4} parent=5 // pred_check_branch
      %138 = sbr.rel (%p135) target = $region12
    $region11: #{_forward_cfg.4} parent=5 // pred_region
      %s139 = ssub.s32 %s9, 1
      // Predicated region
      $region13: #{_forward_cfg.4} parent=11 // pred_check
        %p140 = pneg %p47
      $region14: #{_forward_cfg.4} parent=11 // pred_check_branch
        %142 = sbr.rel (%p140) target = $region16
      $region15: #{_forward_cfg.4} parent=11 // pred_region
        %s143 = smul.u32 2, %s18
        %p144 = scmp.lt.s32.totalorder %s143, 1
        %s145 = scalar_select %p144, %s143, 1
        %s146 = smul.addr %s145, 4
        %s147 = scalar_lea.vmem %s0, %s146
        %s148 = smul.u32 2, %s18
      $region16: #{_forward_cfg.4} parent=11 // pred_fallthru
        _
    $region12: #{_forward_cfg.4} parent=5 // pred_fallthru
      _
    %p149 = scmp.lt.s32.totalorder %s9, 4
    // Predicated region
    $region17: #{_forward_cfg.4} parent=5 // pred_check
      %p150 = pneg %p149
    $region18: #{_forward_cfg.4} parent=5 // pred_check_branch
      %152 = sbr.rel (%p150) target = $region20
    $region19: #{_forward_cfg.4} parent=5 // pred_region
      // Predicated region
      $region21: #{_forward_cfg.4} parent=19 // pred_check
        %p153 = pneg %p67
      $region22: #{_forward_cfg.4} parent=19 // pred_check_branch
        %155 = sbr.rel (%p153) target = $region24
      $region23: #{_forward_cfg.4} parent=19 // pred_region
        %p156 = scmp.lt.s32.totalorder %s17, 3
        %s157 = scalar_select %p156, %s17, 3
        %s158 = smul.addr %s157, 16
        %s159 = smul.addr %s158, 4
        %s160 = scalar_lea.vmem %s1, %s159
      $region24: #{_forward_cfg.4} parent=19 // pred_fallthru
        _
      // Predicated region
      $region25: #{_forward_cfg.4} parent=19 // pred_check
        %p161 = pneg %p93
      $region26: #{_forward_cfg.4} parent=19 // pred_check_branch
        %163 = sbr.rel (%p161) target = $region28
      $region27: #{_forward_cfg.4} parent=19 // pred_region
        %p164 = scmp.lt.s32.totalorder %s17, 3
        %s165 = scalar_select %p164, %s17, 3
        %s166 = scalar_lea.vmem %s2, %s165
      $region28: #{_forward_cfg.4} parent=19 // pred_fallthru
        _
    $region20: #{_forward_cfg.4} parent=5 // pred_fallthru
      _
    %p167 = scmp.le.s32.totalorder 1, %s9
    %p168 = scmp.lt.s32.totalorder %s9, 5
    %p169 = pnand %p167, %p168
    %p170 = pneg %p169
    // Predicated region
    $region29: #{_forward_cfg.4} parent=5 // pred_check
      _
    $region30: #{_forward_cfg.4} parent=5 // pred_check_branch
      %172 = sbr.rel (%p169) target = $region32
    $region31: #{_forward_cfg.4} parent=5 // pred_region
      %s173 = ssub.s32 %s9, 1
      %s174 = smul.u32 2, %s18
      %p175 = scmp.lt.s32.totalorder %s174, 1
      %s176 = scalar_select %p175, %s174, 1
      %s177 = smul.addr %s176, 4
      %s178 = scalar_lea.vmem %s0, %s177
      %p179 = pneg %p47
      %p180 = pneg %p44
      %p181 = scmp.lt.s32.totalorder %s19, 3
      %s182 = scalar_select %p181, %s19, 3
      %s183 = smul.addr %s182, 16
      %s184 = smul.addr %s183, 4
      %s185 = scalar_lea.vmem %s1, %s184
      %p186 = pneg %p73
      %p187 = pneg %p70
      %p188 = scmp.lt.s32.totalorder %s19, 3
      %s189 = scalar_select %p188, %s19, 3
      %s190 = scalar_lea.vmem %s2, %s189
      %p191 = pneg %p99
      %p192 = pneg %p96
      %p193 = pneg %p125
      %p194 = pneg %p122
      %s195 = smul.u32 2, %s18
      %p196 = scmp.lt.s32.totalorder %s195, 1
      %s197 = scalar_select %p196, %s195, 1
      %s198 = smul.addr %s197, 4
      %s199 = scalar_lea.vmem %s3, %s198
      %s200 = smul.u32 2, %s18
      %p201 = scmp.lt.s32.totalorder %s200, 1
      %s202 = scalar_select %p201, %s200, 1
      %s203 = smul.addr %s202, 4
      %s204 = scalar_lea.vmem %s0, %s203
      %s205 = smul.u32 2, %s18
      %p206 = scmp.lt.s32.totalorder %s19, 3
      %s207 = scalar_select %p206, %s19, 3
      %s208 = smul.addr %s207, 16
      %s209 = smul.addr %s208, 4
      %s210 = scalar_lea.vmem %s1, %s209
      %p211 = scmp.lt.s32.totalorder %s19, 3
      %s212 = scalar_select %p211, %s19, 3
      %s213 = scalar_lea.vmem %s2, %s212
      %s214 = smul.u32 2, %s18
      %p215 = scmp.lt.s32.totalorder %s214, 1
      %s216 = scalar_select %p215, %s214, 1
      %s217 = smul.addr %s216, 4
      %s218 = scalar_lea.vmem %s3, %s217
      %s219 = smul.u32 2, %s18
      %p221 = scmp.eq.s32.totalorder %s19, 0
      // Predicated region
      $region33: #{_forward_cfg.4} parent=31 // pred_check
        %p222 = pneg %p221
      $region34: #{_forward_cfg.4} parent=31 // pred_check_branch
        %224 = sbr.rel (%p222) target = $region36
      $region35: #{_forward_cfg.4} parent=31 // pred_region
        %v225 = vld [vmem:[%s204] sm:$0xf]
        %v226 = vld [vmem:[%s204 + $0x4] sm:$0xf]
        %v227 = vunpack.c.l.bf16 %v225
        %v228 = vunpack.c.l.bf16 %v226
        %229 = vst [vmem:[#allocation2] sm:$0xff] %v227
        %230 = vst [vmem:[#allocation2 + $0x8] sm:$0xff] %v228
      $region36: #{_forward_cfg.4} parent=31 // pred_fallthru
        _
      %v231 = vld [vmem:[#allocation2] sm:$0xff]
      %v232 = vld [vmem:[#allocation2 + $0x8] sm:$0xff]
      %v233 = vpack.c.bf16 %v232, %v231
      %v234 = vld [vmem:[%s210] sm:$0xf]
      %v235 = vld [vmem:[%s210 + $0x4] sm:$0xf]
      %v236 = vld [vmem:[%s210 + $0x8] sm:$0xf]
      %v237 = vld [vmem:[%s210 + $0xc] sm:$0xf]
      %v238 = vld [vmem:[%s210 + $0x10] sm:$0xf]
      %v239 = vld [vmem:[%s210 + $0x14] sm:$0xf]
      %v240 = vld [vmem:[%s210 + $0x18] sm:$0xf]
      %v241 = vld [vmem:[%s210 + $0x1c] sm:$0xf]
      %v242 = vld [vmem:[%s210 + $0x20] sm:$0xf]
      %v243 = vld [vmem:[%s210 + $0x24] sm:$0xf]
      %v244 = vld [vmem:[%s210 + $0x28] sm:$0xf]
      %v245 = vld [vmem:[%s210 + $0x2c] sm:$0xf]
      %v246 = vld [vmem:[%s210 + $0x30] sm:$0xf]
      %v247 = vld [vmem:[%s210 + $0x34] sm:$0xf]
      %v248 = vld [vmem:[%s210 + $0x38] sm:$0xf]
      %v249 = vld [vmem:[%s210 + $0x3c] sm:$0xf]
      %v250 = vld [vmem:[%s213] sm:$0x1]
      %v252 = vlaneseq
      %v253 = vshrl.u32 %v252, 7
      %v254 = vsub.s32 0, %v253
      %v255 = vrot.slane %v250, %v254
      %v273 = vunpack.c.l.b16 %v234
      %v274 = vunpack.c.l.b16 %v235
      %v275 = vunpack.c.l.b16 %v236
      %v276 = vunpack.c.l.b16 %v237
      %v277 = vunpack.c.l.b16 %v238
      %v278 = vunpack.c.l.b16 %v239
      %v279 = vunpack.c.l.b16 %v240
      %v280 = vunpack.c.l.b16 %v241
      %v281 = vunpack.c.l.b16 %v242
      %v282 = vunpack.c.l.b16 %v243
      %v283 = vunpack.c.l.b16 %v244
      %v284 = vunpack.c.l.b16 %v245
      %v285 = vunpack.c.l.b16 %v246
      %v286 = vunpack.c.l.b16 %v247
      %v287 = vunpack.c.l.b16 %v248
      %v288 = vunpack.c.l.b16 %v249
      %v289 = vpack.c.b16 %v274, %v273
      %v290 = vpack.c.b16 %v276, %v275
      %v291 = vpack.c.b16 %v278, %v277
      %v292 = vpack.c.b16 %v280, %v279
      %v293 = vpack.c.b16 %v282, %v281
      %v294 = vpack.c.b16 %v284, %v283
      %v295 = vpack.c.b16 %v286, %v285
      %v296 = vpack.c.b16 %v288, %v287
      %305 = vmatprep.subr.bf16.mxu0 0
      %306 = vmatpush1.bf16.msra.mxu0 %v289
      %307 = vmatprep.subr.bf16.mxu0 0
      %308 = vmatpush1.bf16.msra.mxu0 %v290
      %309 = vmatprep.subr.bf16.mxu0 0
      %310 = vmatpush1.bf16.msra.mxu0 %v291
      %311 = vmatprep.subr.bf16.mxu0 0
      %312 = vmatpush1.bf16.msra.mxu0 %v292
      %313 = vmatprep.subr.bf16.mxu0 0
      %314 = vmatpush1.bf16.msra.mxu0 %v293
      %315 = vmatprep.subr.bf16.mxu0 0
      %316 = vmatpush1.bf16.msra.mxu0 %v294
      %317 = vmatprep.subr.bf16.mxu0 0
      %318 = vmatpush1.bf16.msra.mxu0 %v295
      %319 = vmatprep.subr.bf16.mxu0 0
      %320 = vmatpush1.bf16.msra.mxu0 %v296
      %321 = vmatprep.subr.bf16.mxu0 0
      %322 = vmatpush1.bf16.msra.mxu0 0
      %323 = vmatprep.subr.bf16.mxu0 0
      %324 = vmatpush1.bf16.msra.mxu0 0
      %325 = vmatprep.subr.bf16.mxu0 0
      %326 = vmatpush1.bf16.msra.mxu0 0
      %327 = vmatprep.subr.bf16.mxu0 0
      %328 = vmatpush1.bf16.msra.mxu0 0
      %329 = vmatprep.subr.bf16.mxu0 0
      %330 = vmatpush1.bf16.msra.mxu0 0
      %331 = vmatprep.subr.bf16.mxu0 0
      %332 = vmatpush1.bf16.msra.mxu0 0
      %333 = vmatprep.subr.bf16.mxu0 0
      %334 = vmatpush1.bf16.msra.mxu0 0
      %335 = vmatprep.subr.bf16.mxu0 0
      %336 = vmatpush1.bf16.msra.mxu0 0
      %337 = vmatprep.mubr.bf16.mxu0 0
      %338 = vmatmul.mubr.bf16.gmra.mrb[0].mxu0 %v233
      %v339 = vpop.f32.mrb[0].mxu0
      %v340 = vadd.f32 %v255, %v339
      %v341 = vpop.f32.mrb[0].mxu0
      %v342 = vpop.f32.mrb[0].mxu0
      %v343 = vadd.f32 %v255, %v342
      %v344 = vpop.f32.mrb[0].mxu0
      %345 = vdwg.mxu0
      %v346 = vmul.f32 %v340, %v340
      %v347 = vmul.f32 %v343, %v343
      %v348 = vmul.f32 %v340, %v346
      %v349 = vmul.f32 %v343, %v347
      %v350 = vmul.f32 %v348, 0.044715
      %v351 = vmul.f32 %v349, 0.044715
      %v352 = vadd.f32 %v340, %v350
      %v353 = vadd.f32 %v343, %v351
      %v354 = vmul.f32 %v352, 0.7978846
      %v355 = vmul.f32 %v353, 0.7978846
      %v356 = vtanh.pop %v354
      %v357 = vtanh.pop %v355
      %v358 = vadd.f32 %v356, 1.0
      %v359 = vadd.f32 %v357, 1.0
      %v360 = vmul.f32 %v358, 0.5
      %v361 = vmul.f32 %v359, 0.5
      %v362 = vmul.f32 %v340, %v360
      %v363 = vmul.f32 %v343, %v361
      %v364 = vadd.f32 %v231, %v362
      %v365 = vadd.f32 %v232, %v363
      %366 = vst [vmem:[#allocation2] sm:$0xff] %v364
      %367 = vst [vmem:[#allocation2 + $0x8] sm:$0xff] %v365
      %p368 = scmp.eq.s32.totalorder %s19, 3
      // Predicated region
      $region37: #{_forward_cfg.4} parent=31 // pred_check
        %p369 = pneg %p368
      $region38: #{_forward_cfg.4} parent=31 // pred_check_branch
        %371 = sbr.rel (%p369) target = $region40
      $region39: #{_forward_cfg.4} parent=31 // pred_region
        %v372 = vpack.c.bf16 %v365, %v364
        %v374 = vunpack.c.l.b16 %v372
        %v375 = vunpack.c.h.b16 %v372
        %v376 = vpack.c.b16 %v374, %v374
        %v377 = vpack.c.b16 %v375, %v375
        %380 = vst [vmem:[%s218] sm:$0xf] %v376
        %381 = vst [vmem:[%s218 + $0x4] sm:$0xf] %v377
      $region40: #{_forward_cfg.4} parent=31 // pred_fallthru
        _
      %s382 = smul.u32 2, %s18
      %p383 = scmp.lt.s32.totalorder %s382, 1
      %s384 = scalar_select %p383, %s382, 1
      %s385 = smul.addr %s384, 4
      %s386 = scalar_lea.vmem %s3, %s385
      // Predicated region
      $region41: #{_forward_cfg.4} parent=31 // pred_check
        %p387 = pneg %p122
      $region42: #{_forward_cfg.4} parent=31 // pred_check_branch
        %389 = sbr.rel (%p387) target = $region44
      $region43: #{_forward_cfg.4} parent=31 // pred_region
        %s390 = smul.u32 2, %s18
      $region44: #{_forward_cfg.4} parent=31 // pred_fallthru
        _
      // Predicated region
      $region45: #{_forward_cfg.4} parent=31 // pred_check
        %p391 = pneg %p122
      $region46: #{_forward_cfg.4} parent=31 // pred_check_branch
        %393 = sbr.rel (%p391) target = $region48
      $region47: #{_forward_cfg.4} parent=31 // pred_region
        %s394 = smul.u32 2, %s18
        %p395 = scmp.lt.s32.totalorder %s394, 1
        %s396 = scalar_select %p395, %s394, 1
        %s397 = smul.addr %s396, 4
        %s398 = scalar_lea.vmem %s3, %s397
      $region48: #{_forward_cfg.4} parent=31 // pred_fallthru
        _
    $region32: #{_forward_cfg.4} parent=5 // pred_fallthru
      _
    %p399 = scmp.le.s32.totalorder 2, %s9
    // Predicated region
    $region49: #{_forward_cfg.4} parent=5 // pred_check
      %p400 = pneg %p399
    $region50: #{_forward_cfg.4} parent=5 // pred_check_branch
      %402 = sbr.rel (%p400) target = $region52
    $region51: #{_forward_cfg.4} parent=5 // pred_region
      %s403 = ssub.s32 %s9, 2
    $region52: #{_forward_cfg.4} parent=5 // pred_fallthru
      _
  $region6: #{_forward_cfg.4} parent=0 // loop_footer
    %s13 = sadd.s32 1, %s9
  $region7: #{_forward_cfg.4} parent=0 // loop_footer_branch
    %8 = sbr.rel target = $region3
  $region8: #{_forward_cfg.4} parent=0 // loop_exit
    _

// kernel: _forward_cfg.5
$region0: #{_forward_cfg.5}
  #allocation0 [shape = 'u32[]', space=smem, size = 0x4, offset = 0x4, fixed_abs, tag = 'smem constant byte address 0x4 - core index']
  #allocation1 [shape = 'u32[144,128]{1,0:T(1,128)}', space=vmem, size = 0x12000, scoped, tag = 'internal scratch']
  %s0 = inlined_call_operand.vmem [shape: bf16[16,128], index: 0, kind: input, shape index: {}]
  %s1 = inlined_call_operand.vmem [shape: bf16[128,128], index: 1, kind: input, shape index: {}]
  %s2 = inlined_call_operand.vmem [shape: f32[1,128], index: 2, kind: input, shape index: {}]
  %s3 = inlined_call_operand.vmem [shape: f32[16,128], index: 3, kind: output, shape index: {}]
  %s4 = sld [smem:[#allocation0]]
  $region22: #{_forward_cfg.5} parent=0
    _
  %s6 = ssub.s32 1, %s4
  %s7 = scalar_select 0, %s6, %s4
  // Predicated region
  $region2: #{_forward_cfg.5} parent=0 // pred_check
    _
  $region3: #{_forward_cfg.5} parent=0 // pred_check_branch
    %9 = sbr.rel (0) target = $region5
  $region4: #{_forward_cfg.5} parent=0 // pred_region
    _
  $region5: #{_forward_cfg.5} parent=0 // pred_fallthru
    _
  // Predicated region
  $region6: #{_forward_cfg.5} parent=0 // pred_check
    _
  $region7: #{_forward_cfg.5} parent=0 // pred_check_branch
    %11 = sbr.rel (0) target = $region9
  $region8: #{_forward_cfg.5} parent=0 // pred_region
    _
  $region9: #{_forward_cfg.5} parent=0 // pred_fallthru
    _
  // Predicated region
  $region10: #{_forward_cfg.5} parent=0 // pred_check
    _
  $region11: #{_forward_cfg.5} parent=0 // pred_check_branch
    %13 = sbr.rel (0) target = $region13
  $region12: #{_forward_cfg.5} parent=0 // pred_region
    _
  $region13: #{_forward_cfg.5} parent=0 // pred_fallthru
    _
  %v15 = vld [vmem:[%s0] sm:$0xf]
  %v16 = vld [vmem:[%s0 + $0x4] sm:$0xf]
  %v17 = vld [vmem:[%s1] sm:$0xf]
  %v18 = vld [vmem:[%s1 + $0x4] sm:$0xf]
  %v19 = vld [vmem:[%s1 + $0x8] sm:$0xf]
  %v20 = vld [vmem:[%s1 + $0xc] sm:$0xf]
  %v21 = vld [vmem:[%s1 + $0x10] sm:$0xf]
  %v22 = vld [vmem:[%s1 + $0x14] sm:$0xf]
  %v23 = vld [vmem:[%s1 + $0x18] sm:$0xf]
  %v24 = vld [vmem:[%s1 + $0x1c] sm:$0xf]
  %v25 = vld [vmem:[%s1 + $0x20] sm:$0xf]
  %v26 = vld [vmem:[%s1 + $0x24] sm:$0xf]
  %v27 = vld [vmem:[%s1 + $0x28] sm:$0xf]
  %v28 = vld [vmem:[%s1 + $0x2c] sm:$0xf]
  %v29 = vld [vmem:[%s1 + $0x30] sm:$0xf]
  %v30 = vld [vmem:[%s1 + $0x34] sm:$0xf]
  %v31 = vld [vmem:[%s1 + $0x38] sm:$0xf]
  %v32 = vld [vmem:[%s1 + $0x3c] sm:$0xf]
  %v33 = vld [vmem:[%s2] sm:$0x1]
  %v35 = vlaneseq
  %v36 = vshrl.u32 %v35, 7
  %v37 = vsub.s32 0, %v36
  %v38 = vrot.slane %v33, %v37
  %v42 = vunpack.c.l.b16 %v15
  %v43 = vunpack.c.l.b16 %v16
  %v44 = vpack.c.b16 %v43, %v42
  %v62 = vunpack.c.l.b16 %v17
  %v63 = vunpack.c.l.b16 %v18
  %v64 = vunpack.c.l.b16 %v19
  %v65 = vunpack.c.l.b16 %v20
  %v66 = vunpack.c.l.b16 %v21
  %v67 = vunpack.c.l.b16 %v22
  %v68 = vunpack.c.l.b16 %v23
  %v69 = vunpack.c.l.b16 %v24
  %v70 = vunpack.c.l.b16 %v25
  %v71 = vunpack.c.l.b16 %v26
  %v72 = vunpack.c.l.b16 %v27
  %v73 = vunpack.c.l.b16 %v28
  %v74 = vunpack.c.l.b16 %v29
  %v75 = vunpack.c.l.b16 %v30
  %v76 = vunpack.c.l.b16 %v31
  %v77 = vunpack.c.l.b16 %v32
  %v78 = vpack.c.b16 %v63, %v62
  %v79 = vpack.c.b16 %v65, %v64
  %v80 = vpack.c.b16 %v67, %v66
  %v81 = vpack.c.b16 %v69, %v68
  %v82 = vpack.c.b16 %v71, %v70
  %v83 = vpack.c.b16 %v73, %v72
  %v84 = vpack.c.b16 %v75, %v74
  %v85 = vpack.c.b16 %v77, %v76
  %94 = vmatprep.subr.bf16.mxu0 0
  %95 = vmatpush1.bf16.msra.mxu0 %v78
  %96 = vmatprep.subr.bf16.mxu0 0
  %97 = vmatpush1.bf16.msra.mxu0 %v79
  %98 = vmatprep.subr.bf16.mxu0 0
  %99 = vmatpush1.bf16.msra.mxu0 %v80
  %100 = vmatprep.subr.bf16.mxu0 0
  %101 = vmatpush1.bf16.msra.mxu0 %v81
  %102 = vmatprep.subr.bf16.mxu0 0
  %103 = vmatpush1.bf16.msra.mxu0 %v82
  %104 = vmatprep.subr.bf16.mxu0 0
  %105 = vmatpush1.bf16.msra.mxu0 %v83
  %106 = vmatprep.subr.bf16.mxu0 0
  %107 = vmatpush1.bf16.msra.mxu0 %v84
  %108 = vmatprep.subr.bf16.mxu0 0
  %109 = vmatpush1.bf16.msra.mxu0 %v85
  %110 = vmatprep.subr.bf16.mxu0 0
  %111 = vmatpush1.bf16.msra.mxu0 0
  %112 = vmatprep.subr.bf16.mxu0 0
  %113 = vmatpush1.bf16.msra.mxu0 0
  %114 = vmatprep.subr.bf16.mxu0 0
  %115 = vmatpush1.bf16.msra.mxu0 0
  %116 = vmatprep.subr.bf16.mxu0 0
  %117 = vmatpush1.bf16.msra.mxu0 0
  %118 = vmatprep.subr.bf16.mxu0 0
  %119 = vmatpush1.bf16.msra.mxu0 0
  %120 = vmatprep.subr.bf16.mxu0 0
  %121 = vmatpush1.bf16.msra.mxu0 0
  %122 = vmatprep.subr.bf16.mxu0 0
  %123 = vmatpush1.bf16.msra.mxu0 0
  %124 = vmatprep.subr.bf16.mxu0 0
  %125 = vmatpush1.bf16.msra.mxu0 0
  %126 = vmatprep.mubr.bf16.mxu0 0
  %127 = vmatmul.mubr.bf16.gmra.mrb[0].mxu0 %v44
  %v128 = vpop.f32.mrb[0].mxu0
  %v129 = vadd.f32 %v38, %v128
  %v130 = vpop.f32.mrb[0].mxu0
  %v131 = vpop.f32.mrb[0].mxu0
  %v132 = vadd.f32 %v38, %v131
  %v133 = vpop.f32.mrb[0].mxu0
  %134 = vdwg.mxu0
  %135 = vst [vmem:[%s3] sm:$0xff] %v129
  %136 = vst [vmem:[%s3 + $0x8] sm:$0xff] %v132
  // Predicated region
  $region14: #{_forward_cfg.5} parent=0 // pred_check
    _
  $region15: #{_forward_cfg.5} parent=0 // pred_check_branch
    %138 = sbr.rel (0) target = $region17
  $region16: #{_forward_cfg.5} parent=0 // pred_region
    _
  $region17: #{_forward_cfg.5} parent=0 // pred_fallthru
    _
  // Predicated region
  $region18: #{_forward_cfg.5} parent=0 // pred_check
    _
  $region19: #{_forward_cfg.5} parent=0 // pred_check_branch
    %140 = sbr.rel (0) target = $region21
  $region20: #{_forward_cfg.5} parent=0 // pred_region
    _
  $region21: #{_forward_cfg.5} parent=0 // pred_fallthru
    _

// kernel: _forward_cfg.3
$region0: #{_forward_cfg.3}
  #allocation0 [shape = 'u32[]', space=smem, size = 0x4, offset = 0x4, fixed_abs, tag = 'smem constant byte address 0x4 - core index']
  #allocation1 [shape = 'u32[144,128]{1,0:T(1,128)}', space=vmem, size = 0x12000, scoped, tag = 'internal scratch']
  %s0 = inlined_call_operand.vmem [shape: bf16[16,256], index: 0, kind: input, shape index: {}]
  %s1 = inlined_call_operand.vmem [shape: bf16[256,128], index: 1, kind: input, shape index: {}]
  %s2 = inlined_call_operand.vmem [shape: f32[1,128], index: 2, kind: input, shape index: {}]
  %s3 = inlined_call_operand.vmem [shape: bf16[16,128], index: 3, kind: output, shape index: {}]
  %s4 = sld [smem:[#allocation0]]
  $region22: #{_forward_cfg.3} parent=0
    _
  %s6 = ssub.s32 1, %s4
  %s7 = scalar_select 0, %s6, %s4
  // Predicated region
  $region2: #{_forward_cfg.3} parent=0 // pred_check
    _
  $region3: #{_forward_cfg.3} parent=0 // pred_check_branch
    %9 = sbr.rel (0) target = $region5
  $region4: #{_forward_cfg.3} parent=0 // pred_region
    _
  $region5: #{_forward_cfg.3} parent=0 // pred_fallthru
    _
  // Predicated region
  $region6: #{_forward_cfg.3} parent=0 // pred_check
    _
  $region7: #{_forward_cfg.3} parent=0 // pred_check_branch
    %11 = sbr.rel (0) target = $region9
  $region8: #{_forward_cfg.3} parent=0 // pred_region
    _
  $region9: #{_forward_cfg.3} parent=0 // pred_fallthru
    _
  // Predicated region
  $region10: #{_forward_cfg.3} parent=0 // pred_check
    _
  $region11: #{_forward_cfg.3} parent=0 // pred_check_branch
    %13 = sbr.rel (0) target = $region13
  $region12: #{_forward_cfg.3} parent=0 // pred_region
    _
  $region13: #{_forward_cfg.3} parent=0 // pred_fallthru
    _
  %v15 = vld [vmem:[%s0] sm:$0xff]
  %v16 = vld [vmem:[%s0 + $0x8] sm:$0xff]
  %v17 = vld [vmem:[%s1] sm:$0xf]
  %v18 = vld [vmem:[%s1 + $0x4] sm:$0xf]
  %v19 = vld [vmem:[%s1 + $0x8] sm:$0xf]
  %v20 = vld [vmem:[%s1 + $0xc] sm:$0xf]
  %v21 = vld [vmem:[%s1 + $0x10] sm:$0xf]
  %v22 = vld [vmem:[%s1 + $0x14] sm:$0xf]
  %v23 = vld [vmem:[%s1 + $0x18] sm:$0xf]
  %v24 = vld [vmem:[%s1 + $0x1c] sm:$0xf]
  %v25 = vld [vmem:[%s1 + $0x20] sm:$0xf]
  %v26 = vld [vmem:[%s1 + $0x24] sm:$0xf]
  %v27 = vld [vmem:[%s1 + $0x28] sm:$0xf]
  %v28 = vld [vmem:[%s1 + $0x2c] sm:$0xf]
  %v29 = vld [vmem:[%s1 + $0x30] sm:$0xf]
  %v30 = vld [vmem:[%s1 + $0x34] sm:$0xf]
  %v31 = vld [vmem:[%s1 + $0x38] sm:$0xf]
  %v32 = vld [vmem:[%s1 + $0x3c] sm:$0xf]
  %v33 = vld [vmem:[%s1 + $0x40] sm:$0xf]
  %v34 = vld [vmem:[%s1 + $0x44] sm:$0xf]
  %v35 = vld [vmem:[%s1 + $0x48] sm:$0xf]
  %v36 = vld [vmem:[%s1 + $0x4c] sm:$0xf]
  %v37 = vld [vmem:[%s1 + $0x50] sm:$0xf]
  %v38 = vld [vmem:[%s1 + $0x54] sm:$0xf]
  %v39 = vld [vmem:[%s1 + $0x58] sm:$0xf]
  %v40 = vld [vmem:[%s1 + $0x5c] sm:$0xf]
  %v41 = vld [vmem:[%s1 + $0x60] sm:$0xf]
  %v42 = vld [vmem:[%s1 + $0x64] sm:$0xf]
  %v43 = vld [vmem:[%s1 + $0x68] sm:$0xf]
  %v44 = vld [vmem:[%s1 + $0x6c] sm:$0xf]
  %v45 = vld [vmem:[%s1 + $0x70] sm:$0xf]
  %v46 = vld [vmem:[%s1 + $0x74] sm:$0xf]
  %v47 = vld [vmem:[%s1 + $0x78] sm:$0xf]
  %v48 = vld [vmem:[%s1 + $0x7c] sm:$0xf]
  %v49 = vld [vmem:[%s2] sm:$0x1]
  %v51 = vlaneseq
  %v52 = vshrl.u32 %v51, 7
  %v53 = vsub.s32 0, %v52
  %v54 = vrot.slane %v49, %v53
  %v58 = vunpack.c.l.b16 %v15
  %v59 = vunpack.c.h.b16 %v15
  %v60 = vunpack.c.l.b16 %v16
  %v61 = vunpack.c.h.b16 %v16
  %v62 = vpack.c.b16 %v60, %v58
  %v63 = vpack.c.b16 %v61, %v59
  %v98 = vunpack.c.l.b16 %v17
  %v99 = vunpack.c.l.b16 %v18
  %v100 = vunpack.c.l.b16 %v19
  %v101 = vunpack.c.l.b16 %v20
  %v102 = vunpack.c.l.b16 %v21
  %v103 = vunpack.c.l.b16 %v22
  %v104 = vunpack.c.l.b16 %v23
  %v105 = vunpack.c.l.b16 %v24
  %v106 = vunpack.c.l.b16 %v25
  %v107 = vunpack.c.l.b16 %v26
  %v108 = vunpack.c.l.b16 %v27
  %v109 = vunpack.c.l.b16 %v28
  %v110 = vunpack.c.l.b16 %v29
  %v111 = vunpack.c.l.b16 %v30
  %v112 = vunpack.c.l.b16 %v31
  %v113 = vunpack.c.l.b16 %v32
  %v114 = vunpack.c.l.b16 %v33
  %v115 = vunpack.c.l.b16 %v34
  %v116 = vunpack.c.l.b16 %v35
  %v117 = vunpack.c.l.b16 %v36
  %v118 = vunpack.c.l.b16 %v37
  %v119 = vunpack.c.l.b16 %v38
  %v120 = vunpack.c.l.b16 %v39
  %v121 = vunpack.c.l.b16 %v40
  %v122 = vunpack.c.l.b16 %v41
  %v123 = vunpack.c.l.b16 %v42
  %v124 = vunpack.c.l.b16 %v43
  %v125 = vunpack.c.l.b16 %v44
  %v126 = vunpack.c.l.b16 %v45
  %v127 = vunpack.c.l.b16 %v46
  %v128 = vunpack.c.l.b16 %v47
  %v129 = vunpack.c.l.b16 %v48
  %v130 = vpack.c.b16 %v99, %v98
  %v131 = vpack.c.b16 %v101, %v100
  %v132 = vpack.c.b16 %v103, %v102
  %v133 = vpack.c.b16 %v105, %v104
  %v134 = vpack.c.b16 %v107, %v106
  %v135 = vpack.c.b16 %v109, %v108
  %v136 = vpack.c.b16 %v111, %v110
  %v137 = vpack.c.b16 %v113, %v112
  %v138 = vpack.c.b16 %v115, %v114
  %v139 = vpack.c.b16 %v117, %v116
  %v140 = vpack.c.b16 %v119, %v118
  %v141 = vpack.c.b16 %v121, %v120
  %v142 = vpack.c.b16 %v123, %v122
  %v143 = vpack.c.b16 %v125, %v124
  %v144 = vpack.c.b16 %v127, %v126
  %v145 = vpack.c.b16 %v129, %v128
  %162 = vmatprep.subr.bf16.mxu0 0
  %163 = vmatpush1.bf16.msra.mxu0 %v130
  %164 = vmatprep.subr.bf16.mxu0 0
  %165 = vmatpush1.bf16.msra.mxu0 %v131
  %166 = vmatprep.subr.bf16.mxu0 0
  %167 = vmatpush1.bf16.msra.mxu0 %v132
  %168 = vmatprep.subr.bf16.mxu0 0
  %169 = vmatpush1.bf16.msra.mxu0 %v133
  %170 = vmatprep.subr.bf16.mxu0 0
  %171 = vmatpush1.bf16.msra.mxu0 %v134
  %172 = vmatprep.subr.bf16.mxu0 0
  %173 = vmatpush1.bf16.msra.mxu0 %v135
  %174 = vmatprep.subr.bf16.mxu0 0
  %175 = vmatpush1.bf16.msra.mxu0 %v136
  %176 = vmatprep.subr.bf16.mxu0 0
  %177 = vmatpush1.bf16.msra.mxu0 %v137
  %178 = vmatprep.subr.bf16.mxu0 0
  %179 = vmatpush1.bf16.msra.mxu0 %v138
  %180 = vmatprep.subr.bf16.mxu0 0
  %181 = vmatpush1.bf16.msra.mxu0 %v139
  %182 = vmatprep.subr.bf16.mxu0 0
  %183 = vmatpush1.bf16.msra.mxu0 %v140
  %184 = vmatprep.subr.bf16.mxu0 0
  %185 = vmatpush1.bf16.msra.mxu0 %v141
  %186 = vmatprep.subr.bf16.mxu0 0
  %187 = vmatpush1.bf16.msra.mxu0 %v142
  %188 = vmatprep.subr.bf16.mxu0 0
  %189 = vmatpush1.bf16.msra.mxu0 %v143
  %190 = vmatprep.subr.bf16.mxu0 0
  %191 = vmatpush1.bf16.msra.mxu0 %v144
  %192 = vmatprep.subr.bf16.mxu0 0
  %193 = vmatpush1.bf16.msra.mxu0 %v145
  %194 = vmatprep.mubr.bf16.mxu0 %v63
  %195 = vmatmul.mubr.bf16.gmra.mrb[0].mxu0 %v62
  %v196 = vpop.f32.mrb[0].mxu0
  %v197 = vadd.f32 %v54, %v196
  %v198 = vpop.f32.mrb[0].mxu0
  %v199 = vpop.f32.mrb[0].mxu0
  %v200 = vadd.f32 %v54, %v199
  %v201 = vpop.f32.mrb[0].mxu0
  %202 = vdwg.mxu0
  %v203 = vpack.c.bf16 %v200, %v197
  %v205 = vunpack.c.l.b16 %v203
  %v206 = vunpack.c.h.b16 %v203
  %v207 = vpack.c.b16 %v205, %v205
  %v208 = vpack.c.b16 %v206, %v206
  %211 = vst [vmem:[%s3] sm:$0xf] %v207
  %212 = vst [vmem:[%s3 + $0x4] sm:$0xf] %v208
  // Predicated region
  $region14: #{_forward_cfg.3} parent=0 // pred_check
    _
  $region15: #{_forward_cfg.3} parent=0 // pred_check_branch
    %214 = sbr.rel (0) target = $region17
  $region16: #{_forward_cfg.3} parent=0 // pred_region
    _
  $region17: #{_forward_cfg.3} parent=0 // pred_fallthru
    _
  // Predicated region
  $region18: #{_forward_cfg.3} parent=0 // pred_check
    _
  $region19: #{_forward_cfg.3} parent=0 // pred_check_branch
    %216 = sbr.rel (0) target = $region21
  $region20: #{_forward_cfg.3} parent=0 // pred_region
    _
  $region21: #{_forward_cfg.3} parent=0 // pred_fallthru
    _

</llo_original>
